<compile_context>
chip_gen: v6e
topology: v6e:2x2x1
jax: 0.10.0
libtpu: 0.0.40
codegen_flags: <defaults>
</compile_context>

<pallas_src>
import jax
import jax.numpy as jnp
from jax.experimental import pallas as pl
from jax.experimental.pallas import tpu as pltpu


def _moirai_moe_kernel(x_ref, wall_ref, ball_ref, seg_ref, b2_ref, o_ref):
    EH, E = seg_ref.shape            # static block shape: (num_experts*hidden, num_experts)

    x = x_ref[...]                                                        # (TB, S)

    # One fused MXU pass: all experts' first layers AND the gating layer.
    #   lanes [0, EH)     -> expert hidden pre-activations
    #   lanes [EH, EH+E)  -> gating logits (NO ReLU on these lanes)
    acts = jnp.dot(x, wall_ref[...], preferred_element_type=jnp.float32) + ball_ref[...]

    h = jnp.maximum(acts[:, :EH], 0.0)                                    # (TB, EH)
    logits = acts[:, EH:EH + E]                                           # (TB, E)

    # Gating softmax; denominator reciprocal on the EUP slot (approx ~2^-12 rel).
    m = jnp.max(logits, axis=-1, keepdims=True)
    ex = jnp.exp(logits - m)
    gate = ex * pl.reciprocal(jnp.sum(ex, axis=-1, keepdims=True), approx=True)  # (TB, E)

    # Per-expert second layers as one block-diagonal segment-sum matmul.
    y = jnp.dot(h, seg_ref[...], preferred_element_type=jnp.float32)      # (TB, E)

    # Gate-weighted combine (expert output bias b2 folded in), produced directly
    # in lane-dense (1, TB) layout via a transposed-RHS matmul so the output
    # store is a full-lane unmasked vst instead of (TB,1) masked partial stores.
    z = gate * (y + b2_ref[...])                                          # (TB, E)
    ones_e = jnp.ones((1, E), jnp.float32)
    out_row = jnp.dot(ones_e, z.T, preferred_element_type=jnp.float32)    # (1, TB)
    o_ref[...] = out_row.astype(o_ref.dtype)


def _choose_batch_tile(batch):
    """Largest useful batch tile: multiple of 8 (sublanes); for big batches a
    multiple of 128 capped at 1024 and >= 2 tiles so both v7x TensorCores work."""
    cap = 1024
    b8 = ((batch + 7) // 8) * 8
    if b8 <= 256:
        return max(b8, 8)
    half_rounded = ((b8 // 2) + 127) // 128 * 128
    return min(cap, half_rounded)


def moirai_moe_forward(x, wg, bg, w1, b1, w2, b2, *, stream_dtype=jnp.float32):
    """x: (B,S); Wg:(S,E); bg:(1,E); W1:(E,S,H); b1:(E,H); W2:(E,H); b2:(1,E)."""
    B, S = x.shape
    E, _, H = w1.shape
    EH = E * H

    # ---- trace-time weight plumbing (wrapper side, never inside the kernel) ----
    # Expert first layers fused: W1 (E,S,H) -> (S, E*H), column e*H+h = W1[e,:,h].
    w1_flat = jnp.transpose(w1, (1, 0, 2)).reshape(S, EH)
    # Gating weight appended after the expert lanes; zero-pad lanes to a multiple of 128.
    n_used = EH + E
    n_lanes = max(128, ((n_used + 127) // 128) * 128)
    w_all = (jnp.zeros((S, n_lanes), jnp.float32)
             .at[:, :EH].set(w1_flat)
             .at[:, EH:n_used].set(wg))
    b_all = (jnp.zeros((1, n_lanes), jnp.float32)
             .at[:, :EH].set(b1.reshape(1, EH))
             .at[:, EH:n_used].set(bg))
    # Block-diagonal segment-sum matrix: seg[e*H+h, e'] = w2[e,h] * (e == e').
    seg = (w2[:, :, None] * jnp.eye(E, dtype=jnp.float32)[:, None, :]).reshape(EH, E)
    b2f = b2.astype(jnp.float32)

    # Only the streamed operand (x) and the MXU weight are optionally bf16; all
    # elementwise math / biases / accumulation stay f32 (v5e has no bf16 VPU/EUP).
    x_s = x.astype(stream_dtype)
    w_all_s = w_all.astype(stream_dtype)

    # ---- batch tiling with wrapper-side padding (no asserts on B) ----
    TB = _choose_batch_tile(B)
    Bp = ((B + TB - 1) // TB) * TB
    if Bp != B:
        x_s = jnp.pad(x_s, ((0, Bp - B), (0, 0)))
    grid = (Bp // TB,)

    itemsize = jnp.dtype(stream_dtype).itemsize
    cost = pl.CostEstimate(
        flops=int(2 * Bp * (S * n_lanes + EH * E + E)),
        transcendentals=int(Bp * (E + 1)),
        bytes_accessed=int(Bp * (S * itemsize + 4)
                           + (S + 1) * n_lanes * itemsize
                           + (EH + 1) * E * 4),
    )

    const = lambda i: (0, 0)
    out2d = pl.pallas_call(
        _moirai_moe_kernel,
        out_shape=jax.ShapeDtypeStruct((Bp // TB, TB), jnp.float32),
        grid=grid,
        in_specs=[
            pl.BlockSpec((TB, S), lambda i: (i, 0)),     # x, streamed over batch
            pl.BlockSpec((S, n_lanes), const),           # fused [W1' | Wg | 0] (resident)
            pl.BlockSpec((1, n_lanes), const),           # fused [b1  | bg | 0]
            pl.BlockSpec((EH, E), const),                # block-diag w2 segment matrix
            pl.BlockSpec((1, E), const),                 # b2
        ],
        out_specs=pl.BlockSpec((1, TB), lambda i: (i, 0)),  # lane-dense output rows
        compiler_params=pltpu.CompilerParams(
            dimension_semantics=("parallel",),
        ),
        cost_estimate=cost,
    )(x_s, w_all_s, b_all, seg, b2f)

    # Layout plumbing back to the module's (B, 1) output.
    return out2d.reshape(Bp, 1)[:B]


def moirai_moe_reference(x, wg, bg, w1, b1, w2, b2):
    """Pure-JAX reference mirroring the PyTorch forward."""
    logits = x @ wg + bg                                                  # (B, E)
    gate = jax.nn.softmax(logits, axis=-1)                                # (B, E)
    h = jnp.maximum(jnp.einsum("bs,esh->beh", x, w1) + b1[None], 0.0)     # (B, E, H)
    y = jnp.einsum("beh,eh->be", h, w2) + b2                              # (B, E)
    return jnp.sum(gate * y, axis=1, keepdims=True)                       # (B, 1)


if __name__ == "__main__":
    # Small, module-consistent shapes: seq_len=16, num_experts=4, hidden_dim=32
    # (E*H = 128 -> the expert-hidden lanes fill exactly one 128-lane tile).
    B, S, E, H = 8, 16, 4, 32

    key = jax.random.PRNGKey(0)
    ks = jax.random.split(key, 8)

    def u(k, shape, fan_in):
        bound = 1.0 / jnp.sqrt(fan_in)
        return jax.random.uniform(k, shape, jnp.float32, -bound, bound)

    x = jax.random.normal(ks[0], (B, S), jnp.float32)
    wg = u(ks[1], (S, E), S)           # gating Linear(S, E) weight (x @ W layout)
    bg = u(ks[2], (1, E), S)           # gating bias
    w1 = u(ks[3], (E, S, H), S)        # per-expert Linear(S, H) weights
    b1 = u(ks[4], (E, H), S)           # per-expert Linear(S, H) biases
    w2 = u(ks[5], (E, H), H)           # per-expert Linear(H, 1) weights (out dim squeezed)
    b2 = u(ks[6], (1, E), H)           # per-expert Linear(H, 1) biases

    # f32 validation path (tight tolerance; only the approx softmax reciprocal differs).
    ref = moirai_moe_reference(x, wg, bg, w1, b1, w2, b2)
    out = jax.block_until_ready(moirai_moe_forward(x, wg, bg, w1, b1, w2, b2))
    assert out.shape == (B, 1), out.shape
    assert jnp.allclose(out, ref, atol=2e-3, rtol=2e-3), (out, ref)

    # Exercise batch padding, a multi-tile grid (both v7x TensorCores), and the
    # bf16-streaming production path recommended for v6e/v7x.
    B2 = 300
    x2 = jax.random.normal(ks[7], (B2, S), jnp.float32)
    ref2 = moirai_moe_reference(x2, wg, bg, w1, b1, w2, b2)

    out2 = jax.block_until_ready(moirai_moe_forward(x2, wg, bg, w1, b1, w2, b2))
    assert out2.shape == (B2, 1), out2.shape
    assert jnp.allclose(out2, ref2, atol=2e-3, rtol=2e-3)

    out2_bf16 = jax.block_until_ready(
        moirai_moe_forward(x2, wg, bg, w1, b1, w2, b2, stream_dtype=jnp.bfloat16))
    assert out2_bf16.shape == (B2, 1)
    assert jnp.allclose(out2_bf16, ref2, atol=5e-2, rtol=5e-2)

    print("KERNEL_OK")
</pallas_src>

<mosaic_0001>
module attributes {stable_mosaic.version = 11 : i64} {
  func.func @_moirai_moe_kernel(%arg0: i32, %arg1: memref<8x16xf32, #tpu.memory_space<vmem>>, %arg2: memref<16x256xf32, #tpu.memory_space<vmem>>, %arg3: memref<1x256xf32, #tpu.memory_space<vmem>>, %arg4: memref<128x4xf32, #tpu.memory_space<vmem>>, %arg5: memref<1x4xf32, #tpu.memory_space<vmem>>, %arg6: memref<1x8xf32, #tpu.memory_space<vmem>>) attributes {dimension_semantics = [#tpu.dimension_semantics<parallel>], iteration_bounds = array<i64: 1>, scalar_prefetch = 0 : i64, scratch_operands = 0 : i64, tpu.core_type = #tpu.core_type<tc>, window_params = [{transform_indices = @transform_0, window_bounds = array<i64: 8, 16>}, {pipeline_mode = #tpu.pipeline_mode<synchronous>, transform_indices = @transform_1, window_bounds = array<i64: 16, 256>}, {pipeline_mode = #tpu.pipeline_mode<synchronous>, transform_indices = @transform_2, window_bounds = array<i64: 1, 256>}, {pipeline_mode = #tpu.pipeline_mode<synchronous>, transform_indices = @transform_3, window_bounds = array<i64: 128, 4>}, {pipeline_mode = #tpu.pipeline_mode<synchronous>, transform_indices = @transform_4, window_bounds = array<i64: 1, 4>}, {transform_indices = @transform_5, window_bounds = array<i64: 1, 8>}]} {
    %c0 = arith.constant 0 : index
    %c0_0 = arith.constant 0 : index
    %0 = vector.load %arg1[%c0, %c0_0] : memref<8x16xf32, #tpu.memory_space<vmem>>, vector<8x16xf32>
    %c0_1 = arith.constant 0 : index
    %c0_2 = arith.constant 0 : index
    %1 = vector.load %arg2[%c0_1, %c0_2] : memref<16x256xf32, #tpu.memory_space<vmem>>, vector<16x256xf32>
    %cst = arith.constant dense<0.000000e+00> : vector<8x256xf32>
    %2 = tpu.matmul %0, %1, %cst {dimension_numbers = #tpu.dot_dimension_numbers<[1], [0], [0], [1], [0, 0, 1, 1], [], []>} : vector<8x16xf32>, vector<16x256xf32>, vector<8x256xf32> -> vector<8x256xf32>
    %c0_3 = arith.constant 0 : index
    %c0_4 = arith.constant 0 : index
    %3 = vector.load %arg3[%c0_3, %c0_4] : memref<1x256xf32, #tpu.memory_space<vmem>>, vector<1x256xf32>
    %4 = vector.broadcast %3 : vector<1x256xf32> to vector<8x256xf32>
    %5 = arith.addf %2, %4 : vector<8x256xf32>
    %6 = vector.extract_strided_slice %5 {offsets = [0, 0], sizes = [8, 128], strides = [1, 1]} : vector<8x256xf32> to vector<8x128xf32>
    %cst_5 = arith.constant 0.000000e+00 : f32
    %7 = vector.broadcast %cst_5 : f32 to vector<8x128xf32>
    %8 = arith.maximumf %6, %7 : vector<8x128xf32>
    %9 = vector.extract_strided_slice %5 {offsets = [0, 128], sizes = [8, 4], strides = [1, 1]} : vector<8x256xf32> to vector<8x4xf32>
    %cst_6 = arith.constant dense<0xFF800000> : vector<8xf32>
    %10 = vector.multi_reduction <maximumf>, %9, %cst_6 [1] : vector<8x4xf32> to vector<8xf32>
    %11 = vector.shape_cast %10 : vector<8xf32> to vector<8x1xf32>
    %12 = vector.broadcast %11 : vector<8x1xf32> to vector<8x4xf32>
    %13 = arith.subf %9, %12 : vector<8x4xf32>
    %14 = math.exp %13 : vector<8x4xf32>
    %cst_7 = arith.constant dense<0.000000e+00> : vector<8xf32>
    %15 = vector.multi_reduction <add>, %14, %cst_7 [1] : vector<8x4xf32> to vector<8xf32>
    %16 = vector.shape_cast %15 : vector<8xf32> to vector<8x1xf32>
    %17 = tpu.reciprocal %16 {approx = true} : vector<8x1xf32> -> vector<8x1xf32>
    %18 = vector.broadcast %17 : vector<8x1xf32> to vector<8x4xf32>
    %19 = arith.mulf %14, %18 : vector<8x4xf32>
    %c0_8 = arith.constant 0 : index
    %c0_9 = arith.constant 0 : index
    %20 = vector.load %arg4[%c0_8, %c0_9] : memref<128x4xf32, #tpu.memory_space<vmem>>, vector<128x4xf32>
    %cst_10 = arith.constant dense<0.000000e+00> : vector<8x4xf32>
    %21 = tpu.matmul %8, %20, %cst_10 {dimension_numbers = #tpu.dot_dimension_numbers<[1], [0], [0], [1], [0, 0, 1, 1], [], []>} : vector<8x128xf32>, vector<128x4xf32>, vector<8x4xf32> -> vector<8x4xf32>
    %c0_11 = arith.constant 0 : index
    %c0_12 = arith.constant 0 : index
    %22 = vector.load %arg5[%c0_11, %c0_12] : memref<1x4xf32, #tpu.memory_space<vmem>>, vector<1x4xf32>
    %23 = vector.broadcast %22 : vector<1x4xf32> to vector<8x4xf32>
    %24 = arith.addf %21, %23 : vector<8x4xf32>
    %25 = arith.mulf %19, %24 : vector<8x4xf32>
    %cst_13 = arith.constant 1.000000e+00 : f32
    %26 = vector.broadcast %cst_13 : f32 to vector<1x4xf32>
    %27 = tpu.transpose %25, [1, 0] : vector<8x4xf32> -> vector<4x8xf32>
    %cst_14 = arith.constant dense<0.000000e+00> : vector<1x8xf32>
    %28 = tpu.matmul %26, %27, %cst_14 {dimension_numbers = #tpu.dot_dimension_numbers<[1], [0], [0], [1], [0, 0, 1, 1], [], []>} : vector<1x4xf32>, vector<4x8xf32>, vector<1x8xf32> -> vector<1x8xf32>
    %c0_15 = arith.constant 0 : index
    %c0_16 = arith.constant 0 : index
    %29 = vector.load %arg6[%c0_15, %c0_16] : memref<1x8xf32, #tpu.memory_space<vmem>>, vector<1x8xf32>
    tpu.vector_store %arg6[%c0_15, %c0_16], %28 {strides = array<i32>} : memref<1x8xf32, #tpu.memory_space<vmem>>, vector<1x8xf32>,
    return
  }
  func.func @transform_0(%arg0: i32) -> (i32, i32) {
    %c0_i32 = arith.constant 0 : i32
    %c0_i32_0 = arith.constant 0 : i32
    return %arg0, %c0_i32 : i32, i32
  }
  func.func @transform_1(%arg0: i32) -> (i32, i32) {
    %c0_i32 = arith.constant 0 : i32
    %c0_i32_0 = arith.constant 0 : i32
    %c0_i32_1 = arith.constant 0 : i32
    return %c0_i32, %c0_i32_0 : i32, i32
  }
  func.func @transform_2(%arg0: i32) -> (i32, i32) {
    %c0_i32 = arith.constant 0 : i32
    %c0_i32_0 = arith.constant 0 : i32
    %c0_i32_1 = arith.constant 0 : i32
    return %c0_i32, %c0_i32_0 : i32, i32
  }
  func.func @transform_3(%arg0: i32) -> (i32, i32) {
    %c0_i32 = arith.constant 0 : i32
    %c0_i32_0 = arith.constant 0 : i32
    %c0_i32_1 = arith.constant 0 : i32
    return %c0_i32, %c0_i32_0 : i32, i32
  }
  func.func @transform_4(%arg0: i32) -> (i32, i32) {
    %c0_i32 = arith.constant 0 : i32
    %c0_i32_0 = arith.constant 0 : i32
    %c0_i32_1 = arith.constant 0 : i32
    return %c0_i32, %c0_i32_0 : i32, i32
  }
  func.func @transform_5(%arg0: i32) -> (i32, i32) {
    %c0_i32 = arith.constant 0 : i32
    %c0_i32_0 = arith.constant 0 : i32
    return %arg0, %c0_i32 : i32, i32
  }
}

</mosaic_0001>

<llo_original>
// kernel: tpu_custom_call.1
$region0: #{tpu_custom_call.1}
  #allocation0 [shape = 'u32[]', space=smem, size = 0x4, offset = 0x4, fixed_abs, tag = 'smem constant byte address 0x4 - core index']
  #allocation1 [shape = 'u32[144,128]{1,0:T(1,128)}', space=vmem, size = 0x12000, scoped, tag = 'internal scratch']
  %s0 = inlined_call_operand.vmem [shape: f32[8,16], index: 0, kind: input, shape index: {}]
  %s1 = inlined_call_operand.vmem [shape: f32[16,256], index: 1, kind: input, shape index: {}]
  %s2 = inlined_call_operand.vmem [shape: f32[1,256], index: 2, kind: input, shape index: {}]
  %s3 = inlined_call_operand.vmem [shape: f32[128,4], index: 3, kind: input, shape index: {}]
  %s4 = inlined_call_operand.vmem [shape: f32[1,4], index: 4, kind: input, shape index: {}]
  %s5 = inlined_call_operand.hbm [shape: f32[1,8], index: 5, kind: output, shape index: {}]
  %s6 = sld [smem:[#allocation0]]
  $region30: #{tpu_custom_call.1} parent=0
    _
  %s8 = ssub.s32 1, %s6
  %s9 = scalar_select 0, %s8, %s6
  $region1: #{tpu_custom_call.1} parent=0
    #allocation2 [shape = 'u8[512]{0}', space=vmem, size = 0x400, scoped, tag = 'output window, operand 0, single buffered']
    #allocation3 [shape = 's32[1]{0}', space=sflag, size = 0x4, scoped, tag = 'scoped memory for tpu_custom_call.1']
    %10 = vsyncpa [#allocation3], 0
    // Predicated region
    $region2: #{tpu_custom_call.1} parent=1 // pred_check
      _
    $region3: #{tpu_custom_call.1} parent=1 // pred_check_branch
      %12 = sbr.rel (0) target = $region5
    $region4: #{tpu_custom_call.1} parent=1 // pred_region
      _
    $region5: #{tpu_custom_call.1} parent=1 // pred_fallthru
      _
    // Predicated region
    $region6: #{tpu_custom_call.1} parent=1 // pred_check
      _
    $region7: #{tpu_custom_call.1} parent=1 // pred_check_branch
      %14 = sbr.rel (0) target = $region9
    $region8: #{tpu_custom_call.1} parent=1 // pred_region
      _
    $region9: #{tpu_custom_call.1} parent=1 // pred_fallthru
      _
    // Predicated region
    $region10: #{tpu_custom_call.1} parent=1 // pred_check
      _
    $region11: #{tpu_custom_call.1} parent=1 // pred_check_branch
      %16 = sbr.rel (0) target = $region13
    $region12: #{tpu_custom_call.1} parent=1 // pred_region
      _
    $region13: #{tpu_custom_call.1} parent=1 // pred_fallthru
      _
    // Predicated region
    $region14: #{tpu_custom_call.1} parent=1 // pred_check
      _
    $region15: #{tpu_custom_call.1} parent=1 // pred_check_branch
      %18 = sbr.rel (0) target = $region17
    $region16: #{tpu_custom_call.1} parent=1 // pred_region
      _
    $region17: #{tpu_custom_call.1} parent=1 // pred_fallthru
      _
    // Predicated region
    $region18: #{tpu_custom_call.1} parent=1 // pred_check
      _
    $region19: #{tpu_custom_call.1} parent=1 // pred_check_branch
      %20 = sbr.rel (0) target = $region21
    $region20: #{tpu_custom_call.1} parent=1 // pred_region
      _
    $region21: #{tpu_custom_call.1} parent=1 // pred_fallthru
      _
    %v21 = vld [vmem:[%s0] sm:$0xff]
    %v22 = vld [vmem:[%s1] sm:$0xff]
    %v23 = vld [vmem:[%s1 + $0x8] sm:$0xff]
    %v24 = vld [vmem:[%s1 + $0x10] sm:$0xff]
    %v25 = vld [vmem:[%s1 + $0x18] sm:$0xff]
    %v26 = vld [vmem:[%s2] sm:$0x3]
    %v28 = vlaneseq
    %v29 = vshrl.u32 %v28, 7
    %v30 = vsub.s32 0, %v29
    %v31 = vrot.slane %v26, %v30
    %v32 = vlaneseq
    %v33 = vshrl.u32 %v32, 7
    %v34 = vsub.s32 1, %v33
    %v35 = vrot.slane %v26, %v34
    %vm38 = vcmask 130048
    %v40 = vsel %vm38, %v21, 0
    %42 = vmatprep.subr.mxu0 0.0
    %43 = vmatpush1.msra.mxu0 0.0
    %44 = vmatprep.subr.mxu0 0.0
    %45 = vmatpush1.msra.mxu0 0.0
    %46 = vmatprep.subr.mxu0 0.0
    %47 = vmatpush1.msra.mxu0 0.0
    %48 = vmatprep.subr.mxu0 0.0
    %49 = vmatpush1.msra.mxu0 0.0
    %50 = vmatprep.subr.mxu0 0.0
    %51 = vmatpush1.msra.mxu0 0.0
    %52 = vmatprep.subr.mxu0 0.0
    %53 = vmatpush1.msra.mxu0 0.0
    %54 = vmatprep.subr.mxu0 0.0
    %55 = vmatpush1.msra.mxu0 0.0
    %56 = vmatprep.subr.mxu0 0.0
    %57 = vmatpush1.msra.mxu0 0.0
    %58 = vmatprep.subr.mxu0 0.0
    %59 = vmatpush1.msra.mxu0 0.0
    %60 = vmatprep.subr.mxu0 0.0
    %61 = vmatpush1.msra.mxu0 0.0
    %62 = vmatprep.subr.mxu0 0.0
    %63 = vmatpush1.msra.mxu0 0.0
    %64 = vmatprep.subr.mxu0 0.0
    %65 = vmatpush1.msra.mxu0 0.0
    %66 = vmatprep.subr.mxu0 0.0
    %67 = vmatpush1.msra.mxu0 0.0
    %68 = vmatprep.subr.mxu0 0.0
    %69 = vmatpush1.msra.mxu0 0.0
    %70 = vmatprep.subr.mxu0 %v25
    %71 = vmatpush1.msra.mxu0 %v24
    %72 = vmatprep.subr.mxu0 %v23
    %73 = vmatpush1.msra.mxu0 %v22
    %74 = vmatprep.subr.mxu0 0.0
    %75 = vmatpush2.msra.mxu0 0.0
    %76 = vmatprep.subr.mxu0 0.0
    %77 = vmatpush2.msra.mxu0 0.0
    %78 = vmatprep.subr.mxu0 0.0
    %79 = vmatpush2.msra.mxu0 0.0
    %80 = vmatprep.subr.mxu0 0.0
    %81 = vmatpush2.msra.mxu0 0.0
    %82 = vmatprep.subr.mxu0 0.0
    %83 = vmatpush2.msra.mxu0 0.0
    %84 = vmatprep.subr.mxu0 0.0
    %85 = vmatpush2.msra.mxu0 0.0
    %86 = vmatprep.subr.mxu0 0.0
    %87 = vmatpush2.msra.mxu0 0.0
    %88 = vmatprep.subr.mxu0 0.0
    %89 = vmatpush2.msra.mxu0 0.0
    %90 = vmatprep.subr.mxu0 0.0
    %91 = vmatpush2.msra.mxu0 0.0
    %92 = vmatprep.subr.mxu0 0.0
    %93 = vmatpush2.msra.mxu0 0.0
    %94 = vmatprep.subr.mxu0 0.0
    %95 = vmatpush2.msra.mxu0 0.0
    %96 = vmatprep.subr.mxu0 0.0
    %97 = vmatpush2.msra.mxu0 0.0
    %98 = vmatprep.subr.mxu0 0.0
    %99 = vmatpush2.msra.mxu0 0.0
    %100 = vmatprep.subr.mxu0 0.0
    %101 = vmatpush2.msra.mxu0 0.0
    %102 = vmatprep.subr.mxu0 0.0
    %103 = vmatpush2.msra.mxu0 0.0
    %104 = vmatprep.subr.mxu0 0.0
    %105 = vmatpush2.msra.mxu0 0.0
    %106 = vmatprep.mubr.f32.mxu0 0.0
    %107 = vmatmul.mubr.f32.gmra.mxu0 %v40
    %v108 = vpop.f32.mrf.mxu0
    %v109 = vadd.f32 %v31, %v108
    %v110 = vpop.f32.mrf.mxu0
    %v111 = vadd.f32 %v35, %v110
    %112 = vdwg.mxu0
    %v113 = vmax.f32 %v109, 0.0
    %vm114 = vcmask 31744
    %v115 = vsel %vm114, %v111, -inf
    %116 = vmax.xlane.f32.xlu0 %v115
    %v117 = vpop.xlane.xlu0 %116
    %v118 = vsub.f32 %v111, %v117
    %v119 = vmul.f32 %v118, 1.442695
    %v120 = vpow.pop %v119
    %v121 = vsel %vm114, %v120, 0.0
    %122 = vadd.xlane.f32.xlu0 %v121
    %v123 = vpop.xlane.xlu0 %122
    %v124 = vrcp.pop %v123
    %v125 = vmul.f32 %v120, %v124
    %v126 = vld [vmem:[%s3] sm:$0xff]
    %v127 = vld [vmem:[%s3 + $0x8] sm:$0xff]
    %v128 = vld [vmem:[%s3 + $0x10] sm:$0xff]
    %v129 = vld [vmem:[%s3 + $0x18] sm:$0xff]
    %v130 = vld [vmem:[%s3 + $0x20] sm:$0xff]
    %v131 = vld [vmem:[%s3 + $0x28] sm:$0xff]
    %v132 = vld [vmem:[%s3 + $0x30] sm:$0xff]
    %v133 = vld [vmem:[%s3 + $0x38] sm:$0xff]
    %v134 = vld [vmem:[%s3 + $0x40] sm:$0xff]
    %v135 = vld [vmem:[%s3 + $0x48] sm:$0xff]
    %v136 = vld [vmem:[%s3 + $0x50] sm:$0xff]
    %v137 = vld [vmem:[%s3 + $0x58] sm:$0xff]
    %v138 = vld [vmem:[%s3 + $0x60] sm:$0xff]
    %v139 = vld [vmem:[%s3 + $0x68] sm:$0xff]
    %v140 = vld [vmem:[%s3 + $0x70] sm:$0xff]
    %v141 = vld [vmem:[%s3 + $0x78] sm:$0xff]
    %v142 = vld [vmem:[%s4] sm:$0x1]
    %v144 = vlaneseq
    %v145 = vshrl.u32 %v144, 7
    %v146 = vsub.s32 0, %v145
    %v147 = vrot.slane %v142, %v146
    %149 = vmatprep.subr.mxu0 0.0
    %150 = vmatpush1.msra.mxu0 %v141
    %151 = vmatprep.subr.mxu0 0.0
    %152 = vmatpush1.msra.mxu0 %v140
    %153 = vmatprep.subr.mxu0 0.0
    %154 = vmatpush1.msra.mxu0 %v139
    %155 = vmatprep.subr.mxu0 0.0
    %156 = vmatpush1.msra.mxu0 %v138
    %157 = vmatprep.subr.mxu0 0.0
    %158 = vmatpush1.msra.mxu0 %v137
    %159 = vmatprep.subr.mxu0 0.0
    %160 = vmatpush1.msra.mxu0 %v136
    %161 = vmatprep.subr.mxu0 0.0
    %162 = vmatpush1.msra.mxu0 %v135
    %163 = vmatprep.subr.mxu0 0.0
    %164 = vmatpush1.msra.mxu0 %v134
    %165 = vmatprep.subr.mxu0 0.0
    %166 = vmatpush1.msra.mxu0 %v133
    %167 = vmatprep.subr.mxu0 0.0
    %168 = vmatpush1.msra.mxu0 %v132
    %169 = vmatprep.subr.mxu0 0.0
    %170 = vmatpush1.msra.mxu0 %v131
    %171 = vmatprep.subr.mxu0 0.0
    %172 = vmatpush1.msra.mxu0 %v130
    %173 = vmatprep.subr.mxu0 0.0
    %174 = vmatpush1.msra.mxu0 %v129
    %175 = vmatprep.subr.mxu0 0.0
    %176 = vmatpush1.msra.mxu0 %v128
    %177 = vmatprep.subr.mxu0 0.0
    %178 = vmatpush1.msra.mxu0 %v127
    %179 = vmatprep.subr.mxu0 0.0
    %180 = vmatpush1.msra.mxu0 %v126
    %181 = vmatprep.subr.mxu0 0.0
    %182 = vmatpush2.msra.mxu0 0.0
    %183 = vmatprep.subr.mxu0 0.0
    %184 = vmatpush2.msra.mxu0 0.0
    %185 = vmatprep.subr.mxu0 0.0
    %186 = vmatpush2.msra.mxu0 0.0
    %187 = vmatprep.subr.mxu0 0.0
    %188 = vmatpush2.msra.mxu0 0.0
    %189 = vmatprep.subr.mxu0 0.0
    %190 = vmatpush2.msra.mxu0 0.0
    %191 = vmatprep.subr.mxu0 0.0
    %192 = vmatpush2.msra.mxu0 0.0
    %193 = vmatprep.subr.mxu0 0.0
    %194 = vmatpush2.msra.mxu0 0.0
    %195 = vmatprep.subr.mxu0 0.0
    %196 = vmatpush2.msra.mxu0 0.0
    %197 = vmatprep.subr.mxu0 0.0
    %198 = vmatpush2.msra.mxu0 0.0
    %199 = vmatprep.subr.mxu0 0.0
    %200 = vmatpush2.msra.mxu0 0.0
    %201 = vmatprep.subr.mxu0 0.0
    %202 = vmatpush2.msra.mxu0 0.0
    %203 = vmatprep.subr.mxu0 0.0
    %204 = vmatpush2.msra.mxu0 0.0
    %205 = vmatprep.subr.mxu0 0.0
    %206 = vmatpush2.msra.mxu0 0.0
    %207 = vmatprep.subr.mxu0 0.0
    %208 = vmatpush2.msra.mxu0 0.0
    %209 = vmatprep.subr.mxu0 0.0
    %210 = vmatpush2.msra.mxu0 0.0
    %211 = vmatprep.subr.mxu0 0.0
    %212 = vmatpush2.msra.mxu0 0.0
    %213 = vmatprep.mubr.f32.mxu0 0.0
    %214 = vmatmul.mubr.f32.gmra.mxu0 %v113
    %v215 = vpop.f32.mrf.mxu0
    %v216 = vadd.f32 %v147, %v215
    %v217 = vpop.f32.mrf.mxu0
    %218 = vdwg.mxu0
    %v219 = vmul.f32 %v125, %v216
    %v221 = vsel %vm114, 1.0, 0
    %v224 = vsel %vm114, %v219, 0
    %226 = vmatprep.subr.mxu0 0.0
    %227 = vmatpush1.xpose.msra.mxu0 0.0
    %228 = vmatprep.subr.mxu0 0.0
    %229 = vmatpush1.xpose.msra.mxu0 0.0
    %230 = vmatprep.subr.mxu0 0.0
    %231 = vmatpush1.xpose.msra.mxu0 0.0
    %232 = vmatprep.subr.mxu0 0.0
    %233 = vmatpush1.xpose.msra.mxu0 0.0
    %234 = vmatprep.subr.mxu0 0.0
    %235 = vmatpush1.xpose.msra.mxu0 0.0
    %236 = vmatprep.subr.mxu0 0.0
    %237 = vmatpush1.xpose.msra.mxu0 0.0
    %238 = vmatprep.subr.mxu0 0.0
    %239 = vmatpush1.xpose.msra.mxu0 0.0
    %240 = vmatprep.subr.mxu0 0.0
    %241 = vmatpush1.xpose.msra.mxu0 0.0
    %242 = vmatprep.subr.mxu0 0.0
    %243 = vmatpush1.xpose.msra.mxu0 0.0
    %244 = vmatprep.subr.mxu0 0.0
    %245 = vmatpush1.xpose.msra.mxu0 0.0
    %246 = vmatprep.subr.mxu0 0.0
    %247 = vmatpush1.xpose.msra.mxu0 0.0
    %248 = vmatprep.subr.mxu0 0.0
    %249 = vmatpush1.xpose.msra.mxu0 0.0
    %250 = vmatprep.subr.mxu0 0.0
    %251 = vmatpush1.xpose.msra.mxu0 0.0
    %252 = vmatprep.subr.mxu0 0.0
    %253 = vmatpush1.xpose.msra.mxu0 0.0
    %254 = vmatprep.subr.mxu0 0.0
    %255 = vmatpush1.xpose.msra.mxu0 0.0
    %256 = vmatprep.subr.mxu0 0.0
    %257 = vmatpush1.xpose.msra.mxu0 %v224
    %258 = vmatprep.subr.mxu0 0.0
    %259 = vmatpush2.xpose.msra.mxu0 0.0
    %260 = vmatprep.subr.mxu0 0.0
    %261 = vmatpush2.xpose.msra.mxu0 0.0
    %262 = vmatprep.subr.mxu0 0.0
    %263 = vmatpush2.xpose.msra.mxu0 0.0
    %264 = vmatprep.subr.mxu0 0.0
    %265 = vmatpush2.xpose.msra.mxu0 0.0
    %266 = vmatprep.subr.mxu0 0.0
    %267 = vmatpush2.xpose.msra.mxu0 0.0
    %268 = vmatprep.subr.mxu0 0.0
    %269 = vmatpush2.xpose.msra.mxu0 0.0
    %270 = vmatprep.subr.mxu0 0.0
    %271 = vmatpush2.xpose.msra.mxu0 0.0
    %272 = vmatprep.subr.mxu0 0.0
    %273 = vmatpush2.xpose.msra.mxu0 0.0
    %274 = vmatprep.subr.mxu0 0.0
    %275 = vmatpush2.xpose.msra.mxu0 0.0
    %276 = vmatprep.subr.mxu0 0.0
    %277 = vmatpush2.xpose.msra.mxu0 0.0
    %278 = vmatprep.subr.mxu0 0.0
    %279 = vmatpush2.xpose.msra.mxu0 0.0
    %280 = vmatprep.subr.mxu0 0.0
    %281 = vmatpush2.xpose.msra.mxu0 0.0
    %282 = vmatprep.subr.mxu0 0.0
    %283 = vmatpush2.xpose.msra.mxu0 0.0
    %284 = vmatprep.subr.mxu0 0.0
    %285 = vmatpush2.xpose.msra.mxu0 0.0
    %286 = vmatprep.subr.mxu0 0.0
    %287 = vmatpush2.xpose.msra.mxu0 0.0
    %288 = vmatprep.subr.mxu0 0.0
    %289 = vmatpush2.xpose.msra.mxu0 0.0
    %290 = vmatprep.mubr.f32.mxu0 0.0
    %291 = vmatmul.mubr.f32.gmra.mxu0 %v221
    %v292 = vpop.f32.mrf.mxu0
    %v293 = vadd.f32 0.0, %v292
    %v294 = vpop.f32.mrf.mxu0
    %295 = vdwg.mxu0
    %vm296 = vcmask 57344
    %297 = vst.msk [vmem:[#allocation2] sm:$0x1] %vm296, %v293
    // Predicated region
    $region22: #{tpu_custom_call.1} parent=1 // pred_check
      _
    $region23: #{tpu_custom_call.1} parent=1 // pred_check_branch
      %299 = sbr.rel (0) target = $region25
    $region24: #{tpu_custom_call.1} parent=1 // pred_region
      %s301 = ssub.s32 16, 16
      %302 = vsyncadd [#allocation3], %s301
      %s304 = sshll.u32 [#allocation2], 4
      %s305 = int_to_ptr.vmem [resolvable:$true] %s304
      %307 = dma.vmem_to_hbm [thread:$0]  %s305, 16, %s5, [#allocation3]
    $region25: #{tpu_custom_call.1} parent=1 // pred_fallthru
      _
    // Predicated region
    $region26: #{tpu_custom_call.1} parent=1 // pred_check
      _
    $region27: #{tpu_custom_call.1} parent=1 // pred_check_branch
      %309 = sbr.rel (0) target = $region29
    $region28: #{tpu_custom_call.1} parent=1 // pred_region
      %310 = dma.done [#allocation3], 16
    $region29: #{tpu_custom_call.1} parent=1 // pred_fallthru
      _
    %311 = vsyncpa [#allocation3], 1

</llo_original>
